<compile_context>
chip_gen: v7x
topology: tpu7x:2x2x1
jax: 0.10.0
libtpu: 0.0.40
codegen_flags: <defaults>
</compile_context>

<pallas_src>
import functools

import jax
import jax.numpy as jnp
from jax import lax
from jax.experimental import pallas as pl
from jax.experimental.pallas import tpu as pltpu

_BN_EPS = 1e-5
_LANE = 128
_SUBLANE = 8


def _cdiv(a, b):
    return -(-a // b)


def _round_up(x, m):
    return _cdiv(x, m) * m


def _pick_hw_tiling(hw, in_c_pad, out_c_pad, op_bytes,
                    vmem_budget_bytes=12 * 1024 * 1024, max_tile=8192):
    """Pick (tile_hw, hw_pad): largest lane tile whose per-step footprint
    (double-buffered x tile + fp32 output tile + double-buffered W^T block)
    fits under ~12 MiB, i.e. inside v5e's 16 MiB default scoped VMEM with
    headroom (v6e/v7x defaults are 32 MiB)."""
    w_bytes = 2 * out_c_pad * in_c_pad * op_bytes          # W^T, double-buffered
    per_col = 2 * (in_c_pad * op_bytes + out_c_pad * 4)    # x tile + fp32 out tile
    avail = max(vmem_budget_bytes - w_bytes - (64 << 10), per_col * _LANE)
    cap = max(_LANE, min(max_tile, (avail // per_col) // _LANE * _LANE))
    # TODO(synk): for very large channel counts (W^T alone near the budget)
    # the contraction/output dims would also need tiling; not needed for
    # PointNet-sized ConvBlocks.
    hw128 = _round_up(hw, _LANE)
    n_tiles = _cdiv(hw128, cap)
    tile_hw = _round_up(_cdiv(hw128, n_tiles), _LANE)
    return int(tile_hw), int(tile_hw * n_tiles)


def _stats_kernel(x_ref, wt_ref, sum_ref, ssq_ref):
    """Pass 1: z = W^T @ x_tile (fp32 accumulation); accumulate per-out-channel
    sum(z) and sum(z^2) into a tiny VMEM-resident accumulator slab (one slab
    per leading 'parallel' split index)."""
    @pl.when((pl.program_id(1) == 0) & (pl.program_id(2) == 0))
    def _init():
        sum_ref[...] = jnp.zeros_like(sum_ref)
        ssq_ref[...] = jnp.zeros_like(ssq_ref)

    z = jnp.dot(wt_ref[...], x_ref[0], preferred_element_type=jnp.float32)
    sum_ref[...] += jnp.sum(z, axis=1, keepdims=True)[None]
    ssq_ref[...] += jnp.sum(z * z, axis=1, keepdims=True)[None]


def _apply_kernel(x_ref, wt_ref, scale_ref, shift_ref, o_ref, *, add_relu):
    """Pass 2: recompute z with the same operands, apply BN affine (fp32) and
    ReLU, store the (1, outC, tile_hw) output tile."""
    z = jnp.dot(wt_ref[...], x_ref[0], preferred_element_type=jnp.float32)
    y = z * scale_ref[...] + shift_ref[...]
    if add_relu:
        y = jnp.maximum(y, 0.0)
    o_ref[...] = y[None].astype(o_ref.dtype)


@functools.partial(jax.jit, static_argnames=("add_relu", "mxu_dtype", "tile_hw"))
def conv_block(x_nchw, w, b, gamma, beta, *, add_relu=True,
               mxu_dtype=jnp.bfloat16, tile_hw=None):
    """Forward of ConvBlock: Conv2d(inC,outC,1) -> BatchNorm2d (training-mode
    batch statistics) -> optional ReLU.

    x_nchw: (N, inC, H, W).  w: PyTorch Conv2d weight (outC, inC, 1, 1) (a 2-D
    (outC, inC) is also accepted).  b: conv bias (outC,) — it shifts the batch
    mean by exactly b and cancels inside batch-stat BatchNorm, so it does not
    affect the output and is not used in the kernels.  Returns (N, outC, H, W).

    mxu_dtype=jnp.bfloat16 (default): operands are cast once and fed to the MXU
    in bf16 with fp32 accumulation.  Pass mxu_dtype=None for a pure-fp32 path.
    """
    n, in_c, h, wd = x_nchw.shape
    w2 = jnp.asarray(w).reshape(jnp.asarray(w).shape[0], in_c)   # (outC, inC) = W^T
    out_c = w2.shape[0]
    hw = h * wd
    count = n * hw
    del b  # cancels exactly under training-mode (batch-statistics) BatchNorm

    op_dtype = jnp.float32 if mxu_dtype is None else mxu_dtype
    op_bytes = jnp.dtype(op_dtype).itemsize

    in_c_pad = _round_up(in_c, _SUBLANE)
    out_c_pad = _round_up(out_c, _SUBLANE)
    if tile_hw is None:
        tile_hw, hw_pad = _pick_hw_tiling(hw, in_c_pad, out_c_pad, op_bytes)
    else:
        assert tile_hw % _LANE == 0
        hw_pad = _round_up(hw, tile_hw)
    hw_tiles = hw_pad // tile_hw

    # Keep NCHW: (N, inC, H, W) -> (N, inC, HW) is a free reshape; pad channels
    # only to a sublane multiple and HW to the lane tile (both no-ops for
    # typical PointNet shapes), then cast ONCE to the MXU operand dtype.
    x3 = x_nchw.reshape(n, in_c, hw)
    if in_c_pad != in_c or hw_pad != hw:
        x3 = jnp.pad(x3, ((0, 0), (0, in_c_pad - in_c), (0, hw_pad - hw)))
    x_ops = x3.astype(op_dtype)                      # reused by BOTH passes

    wt = jnp.zeros((out_c_pad, in_c_pad), jnp.float32).at[:out_c, :in_c].set(
        w2.astype(jnp.float32))
    wt_ops = wt.astype(op_dtype)                     # same operand in both passes
    gp = jnp.zeros((out_c_pad,), jnp.float32).at[:out_c].set(gamma.astype(jnp.float32))
    betp = jnp.zeros((out_c_pad,), jnp.float32).at[:out_c].set(beta.astype(jnp.float32))

    # ---- Pass 1: per-out-channel sum(z), sum(z^2) -------------------------
    # Leading split axis is 'parallel' so v7x's two TensorCores each fill their
    # own accumulator slab; partials are summed in the tiny fold math below.
    split = 2 if (hw_tiles >= 2 and hw_tiles % 2 == 0) else 1
    tiles_per_split = hw_tiles // split

    sum_p, ssq_p = pl.pallas_call(
        _stats_kernel,
        grid=(split, n, tiles_per_split),
        in_specs=[
            pl.BlockSpec((1, in_c_pad, tile_hw),
                         lambda c, i, j: (i, 0, c * tiles_per_split + j)),
            pl.BlockSpec((out_c_pad, in_c_pad), lambda c, i, j: (0, 0)),
        ],
        out_specs=(
            pl.BlockSpec((1, out_c_pad, 1), lambda c, i, j: (c, 0, 0)),
            pl.BlockSpec((1, out_c_pad, 1), lambda c, i, j: (c, 0, 0)),
        ),
        out_shape=(jax.ShapeDtypeStruct((split, out_c_pad, 1), jnp.float32),
                   jax.ShapeDtypeStruct((split, out_c_pad, 1), jnp.float32)),
        compiler_params=pltpu.CompilerParams(
            dimension_semantics=("parallel", "arbitrary", "arbitrary")),
    )(x_ops, wt_ops)

    # ---- Fold BN into a per-channel fp32 affine (O(outC) math) ------------
    inv_count = 1.0 / float(count)
    sum_z = jnp.sum(sum_p, axis=0)[:, 0]
    sum_z2 = jnp.sum(ssq_p, axis=0)[:, 0]
    mean_z = sum_z * inv_count
    # TODO(synk): E[z^2]-E[z]^2 loses precision if |mean(z)| >> std(z); a
    # centered second moment would need an extra pass over the data.
    var_z = jnp.maximum(sum_z2 * inv_count - mean_z * mean_z, 0.0)
    scale = gp * lax.rsqrt(var_z + _BN_EPS)
    shift = betp - mean_z * scale
    scale2 = scale[:, None]          # (outC_pad, 1), applied in fp32 post-matmul
    shift2 = shift[:, None]
    # TODO(synk): PyTorch BatchNorm2d also updates running_mean / running_var in
    # training mode; only the forward output is reproduced here.

    # ---- Pass 2: fused conv + BN affine + ReLU, fully parallel tiles -------
    out3 = pl.pallas_call(
        functools.partial(_apply_kernel, add_relu=add_relu),
        grid=(n, hw_tiles),
        in_specs=[
            pl.BlockSpec((1, in_c_pad, tile_hw), lambda i, j: (i, 0, j)),
            pl.BlockSpec((out_c_pad, in_c_pad), lambda i, j: (0, 0)),
            pl.BlockSpec((out_c_pad, 1), lambda i, j: (0, 0)),
            pl.BlockSpec((out_c_pad, 1), lambda i, j: (0, 0)),
        ],
        out_specs=pl.BlockSpec((1, out_c_pad, tile_hw), lambda i, j: (i, 0, j)),
        out_shape=jax.ShapeDtypeStruct((n, out_c_pad, hw_pad), x_nchw.dtype),
        compiler_params=pltpu.CompilerParams(
            dimension_semantics=("parallel", "parallel")),
    )(x_ops, wt_ops, scale2, shift2)

    return out3[:, :out_c, :hw].reshape(n, out_c, h, wd)


def _reference(x_nchw, w, b, gamma, beta, add_relu=True):
    """Pure-JAX fp32 reference mirroring Conv2d(1x1)+BatchNorm2d(train)+ReLU."""
    in_c = x_nchw.shape[1]
    w2 = jnp.asarray(w).reshape(jnp.asarray(w).shape[0], in_c)   # (outC, inC)
    y = jnp.einsum('nchw,oc->nohw', x_nchw, w2) + b[None, :, None, None]
    mean = jnp.mean(y, axis=(0, 2, 3), keepdims=True)
    var = jnp.mean((y - mean) ** 2, axis=(0, 2, 3), keepdims=True)
    out = (gamma[None, :, None, None] * (y - mean) / jnp.sqrt(var + _BN_EPS)
           + beta[None, :, None, None])
    if add_relu:
        out = jnp.maximum(out, 0.0)
    return out


if __name__ == "__main__":
    key = jax.random.PRNGKey(0)
    k_x, k_w, k_b, k_g, k_be = jax.random.split(key, 5)

    N, inC, H, W = 2, 4, 16, 16
    outC = 8

    x = jax.random.normal(k_x, (N, inC, H, W), dtype=jnp.float32)
    w = jax.random.normal(k_w, (outC, inC, 1, 1), dtype=jnp.float32) * 0.1
    b = jax.random.normal(k_b, (outC,), dtype=jnp.float32) * 0.1
    gamma = 1.0 + 0.1 * jax.random.normal(k_g, (outC,), dtype=jnp.float32)
    beta = 0.1 * jax.random.normal(k_be, (outC,), dtype=jnp.float32)

    for relu in (True, False):
        ref = _reference(x, w, b, gamma, beta, add_relu=relu)

        # fp32-operand path: tight check of the algorithm.
        out32 = jax.block_until_ready(
            conv_block(x, w, b, gamma, beta, add_relu=relu, mxu_dtype=None))
        assert out32.shape == (N, outC, H, W)
        assert jnp.allclose(out32, ref, atol=2e-4, rtol=2e-4), \
            f"fp32 path mismatch vs reference (relu={relu})"

        # default bf16-operand path (fp32 accumulation): bf16-level tolerance.
        out16 = jax.block_until_ready(
            conv_block(x, w, b, gamma, beta, add_relu=relu))
        assert out16.shape == (N, outC, H, W)
        assert jnp.allclose(out16, ref, atol=5e-2, rtol=5e-2), \
            f"bf16 path mismatch vs reference (relu={relu})"

    print("KERNEL_OK")
</pallas_src>

<mosaic_0001>
module attributes {stable_mosaic.version = 11 : i64} {
  func.func @_stats_kernel(%arg0: i32, %arg1: i32, %arg2: i32, %arg3: memref<1x8x256xf32, #tpu.memory_space<vmem>>, %arg4: memref<8x8xf32, #tpu.memory_space<vmem>>, %arg5: memref<1x8x1xf32, #tpu.memory_space<vmem>>, %arg6: memref<1x8x1xf32, #tpu.memory_space<vmem>>) attributes {dimension_semantics = [#tpu.dimension_semantics<parallel>, #tpu.dimension_semantics<arbitrary>, #tpu.dimension_semantics<arbitrary>], iteration_bounds = array<i64: 1, 2, 1>, scalar_prefetch = 0 : i64, scratch_operands = 0 : i64, tpu.core_type = #tpu.core_type<tc>, window_params = [{transform_indices = @transform_0, window_bounds = array<i64: 1, 8, 256>}, {pipeline_mode = #tpu.pipeline_mode<synchronous>, transform_indices = @transform_1, window_bounds = array<i64: 8, 8>}, {transform_indices = @transform_2, window_bounds = array<i64: 1, 8, 1>}, {transform_indices = @transform_3, window_bounds = array<i64: 1, 8, 1>}]} {
    %c0_i32 = arith.constant 0 : i32
    %0 = arith.cmpi eq, %arg1, %c0_i32 : i32
    %c0_i32_0 = arith.constant 0 : i32
    %1 = arith.cmpi eq, %arg2, %c0_i32_0 : i32
    %2 = arith.andi %0, %1 : i1
    %3 = arith.extui %2 : i1 to i32
    %c0_i32_1 = arith.constant 0 : i32
    %4 = arith.cmpi ne, %3, %c0_i32_1 : i32
    scf.if %4 {
      %cst_20 = arith.constant 0.000000e+00 : f32
      %22 = vector.broadcast %cst_20 : f32 to vector<1x8x1xf32>
      %c0_21 = arith.constant 0 : index
      %c0_22 = arith.constant 0 : index
      %c0_23 = arith.constant 0 : index
      %23 = vector.load %arg5[%c0_21, %c0_22, %c0_23] : memref<1x8x1xf32, #tpu.memory_space<vmem>>, vector<1x8x1xf32>
      tpu.vector_store %arg5[%c0_21, %c0_22, %c0_23], %22 {strides = array<i32>} : memref<1x8x1xf32, #tpu.memory_space<vmem>>, vector<1x8x1xf32>,
      %cst_24 = arith.constant 0.000000e+00 : f32
      %24 = vector.broadcast %cst_24 : f32 to vector<1x8x1xf32>
      %c0_25 = arith.constant 0 : index
      %c0_26 = arith.constant 0 : index
      %c0_27 = arith.constant 0 : index
      %25 = vector.load %arg6[%c0_25, %c0_26, %c0_27] : memref<1x8x1xf32, #tpu.memory_space<vmem>>, vector<1x8x1xf32>
      tpu.vector_store %arg6[%c0_25, %c0_26, %c0_27], %24 {strides = array<i32>} : memref<1x8x1xf32, #tpu.memory_space<vmem>>, vector<1x8x1xf32>,
    } else {
    }
    %c0 = arith.constant 0 : index
    %c0_2 = arith.constant 0 : index
    %5 = vector.load %arg4[%c0, %c0_2] : memref<8x8xf32, #tpu.memory_space<vmem>>, vector<8x8xf32>
    %c0_3 = arith.constant 0 : index
    %c0_4 = arith.constant 0 : index
    %c0_5 = arith.constant 0 : index
    %6 = vector.load %arg3[%c0_3, %c0_4, %c0_5] : memref<1x8x256xf32, #tpu.memory_space<vmem>>, vector<1x8x256xf32>
    %7 = vector.shape_cast %6 : vector<1x8x256xf32> to vector<8x256xf32>
    %cst = arith.constant dense<0.000000e+00> : vector<8x256xf32>
    %8 = tpu.matmul %5, %7, %cst {dimension_numbers = #tpu.dot_dimension_numbers<[1], [0], [0], [1], [0, 0, 1, 1], [], []>} : vector<8x8xf32>, vector<8x256xf32>, vector<8x256xf32> -> vector<8x256xf32>
    %c0_6 = arith.constant 0 : index
    %c0_7 = arith.constant 0 : index
    %c0_8 = arith.constant 0 : index
    %9 = vector.load %arg5[%c0_6, %c0_7, %c0_8] : memref<1x8x1xf32, #tpu.memory_space<vmem>>, vector<1x8x1xf32>
    %cst_9 = arith.constant dense<0.000000e+00> : vector<8xf32>
    %10 = vector.multi_reduction <add>, %8, %cst_9 [1] : vector<8x256xf32> to vector<8xf32>
    %11 = vector.shape_cast %10 : vector<8xf32> to vector<8x1xf32>
    %12 = vector.shape_cast %11 : vector<8x1xf32> to vector<1x8x1xf32>
    %13 = arith.addf %9, %12 : vector<1x8x1xf32>
    %c0_10 = arith.constant 0 : index
    %c0_11 = arith.constant 0 : index
    %c0_12 = arith.constant 0 : index
    %14 = vector.load %arg5[%c0_10, %c0_11, %c0_12] : memref<1x8x1xf32, #tpu.memory_space<vmem>>, vector<1x8x1xf32>
    tpu.vector_store %arg5[%c0_10, %c0_11, %c0_12], %13 {strides = array<i32>} : memref<1x8x1xf32, #tpu.memory_space<vmem>>, vector<1x8x1xf32>,
    %c0_13 = arith.constant 0 : index
    %c0_14 = arith.constant 0 : index
    %c0_15 = arith.constant 0 : index
    %15 = vector.load %arg6[%c0_13, %c0_14, %c0_15] : memref<1x8x1xf32, #tpu.memory_space<vmem>>, vector<1x8x1xf32>
    %16 = arith.mulf %8, %8 : vector<8x256xf32>
    %cst_16 = arith.constant dense<0.000000e+00> : vector<8xf32>
    %17 = vector.multi_reduction <add>, %16, %cst_16 [1] : vector<8x256xf32> to vector<8xf32>
    %18 = vector.shape_cast %17 : vector<8xf32> to vector<8x1xf32>
    %19 = vector.shape_cast %18 : vector<8x1xf32> to vector<1x8x1xf32>
    %20 = arith.addf %15, %19 : vector<1x8x1xf32>
    %c0_17 = arith.constant 0 : index
    %c0_18 = arith.constant 0 : index
    %c0_19 = arith.constant 0 : index
    %21 = vector.load %arg6[%c0_17, %c0_18, %c0_19] : memref<1x8x1xf32, #tpu.memory_space<vmem>>, vector<1x8x1xf32>
    tpu.vector_store %arg6[%c0_17, %c0_18, %c0_19], %20 {strides = array<i32>} : memref<1x8x1xf32, #tpu.memory_space<vmem>>, vector<1x8x1xf32>,
    return
  }
  func.func @transform_0(%arg0: i32, %arg1: i32, %arg2: i32) -> (i32, i32, i32) {
    %c1_i32 = arith.constant 1 : i32
    %0 = arith.muli %arg0, %c1_i32 : i32
    %1 = arith.addi %0, %arg2 : i32
    %c0_i32 = arith.constant 0 : i32
    %c0_i32_0 = arith.constant 0 : i32
    return %arg1, %c0_i32, %1 : i32, i32, i32
  }
  func.func @transform_1(%arg0: i32, %arg1: i32, %arg2: i32) -> (i32, i32) {
    %c0_i32 = arith.constant 0 : i32
    %c0_i32_0 = arith.constant 0 : i32
    %c0_i32_1 = arith.constant 0 : i32
    return %c0_i32, %c0_i32_0 : i32, i32
  }
  func.func @transform_2(%arg0: i32, %arg1: i32, %arg2: i32) -> (i32, i32, i32) {
    %c0_i32 = arith.constant 0 : i32
    %c0_i32_0 = arith.constant 0 : i32
    %c0_i32_1 = arith.constant 0 : i32
    return %arg0, %c0_i32, %c0_i32_0 : i32, i32, i32
  }
  func.func @transform_3(%arg0: i32, %arg1: i32, %arg2: i32) -> (i32, i32, i32) {
    %c0_i32 = arith.constant 0 : i32
    %c0_i32_0 = arith.constant 0 : i32
    %c0_i32_1 = arith.constant 0 : i32
    return %arg0, %c0_i32, %c0_i32_0 : i32, i32, i32
  }
}

module attributes {stable_mosaic.version = 11 : i64} {
  func.func @_apply_kernel(%arg0: i32, %arg1: i32, %arg2: memref<1x8x256xf32, #tpu.memory_space<vmem>>, %arg3: memref<8x8xf32, #tpu.memory_space<vmem>>, %arg4: memref<8x1xf32, #tpu.memory_space<vmem>>, %arg5: memref<8x1xf32, #tpu.memory_space<vmem>>, %arg6: memref<1x8x256xf32, #tpu.memory_space<vmem>>) attributes {dimension_semantics = [#tpu.dimension_semantics<parallel>, #tpu.dimension_semantics<parallel>], iteration_bounds = array<i64: 2, 1>, scalar_prefetch = 0 : i64, scratch_operands = 0 : i64, tpu.core_type = #tpu.core_type<tc>, window_params = [{transform_indices = @transform_0, window_bounds = array<i64: 1, 8, 256>}, {pipeline_mode = #tpu.pipeline_mode<synchronous>, transform_indices = @transform_1, window_bounds = array<i64: 8, 8>}, {pipeline_mode = #tpu.pipeline_mode<synchronous>, transform_indices = @transform_2, window_bounds = array<i64: 8, 1>}, {pipeline_mode = #tpu.pipeline_mode<synchronous>, transform_indices = @transform_3, window_bounds = array<i64: 8, 1>}, {transform_indices = @transform_4, window_bounds = array<i64: 1, 8, 256>}]} {
    %c0 = arith.constant 0 : index
    %c0_0 = arith.constant 0 : index
    %0 = vector.load %arg3[%c0, %c0_0] : memref<8x8xf32, #tpu.memory_space<vmem>>, vector<8x8xf32>
    %c0_1 = arith.constant 0 : index
    %c0_2 = arith.constant 0 : index
    %c0_3 = arith.constant 0 : index
    %1 = vector.load %arg2[%c0_1, %c0_2, %c0_3] : memref<1x8x256xf32, #tpu.memory_space<vmem>>, vector<1x8x256xf32>
    %2 = vector.shape_cast %1 : vector<1x8x256xf32> to vector<8x256xf32>
    %cst = arith.constant dense<0.000000e+00> : vector<8x256xf32>
    %3 = tpu.matmul %0, %2, %cst {dimension_numbers = #tpu.dot_dimension_numbers<[1], [0], [0], [1], [0, 0, 1, 1], [], []>} : vector<8x8xf32>, vector<8x256xf32>, vector<8x256xf32> -> vector<8x256xf32>
    %c0_4 = arith.constant 0 : index
    %c0_5 = arith.constant 0 : index
    %4 = vector.load %arg4[%c0_4, %c0_5] : memref<8x1xf32, #tpu.memory_space<vmem>>, vector<8x1xf32>
    %5 = vector.broadcast %4 : vector<8x1xf32> to vector<8x256xf32>
    %6 = arith.mulf %3, %5 : vector<8x256xf32>
    %c0_6 = arith.constant 0 : index
    %c0_7 = arith.constant 0 : index
    %7 = vector.load %arg5[%c0_6, %c0_7] : memref<8x1xf32, #tpu.memory_space<vmem>>, vector<8x1xf32>
    %8 = vector.broadcast %7 : vector<8x1xf32> to vector<8x256xf32>
    %9 = arith.addf %6, %8 : vector<8x256xf32>
    %cst_8 = arith.constant 0.000000e+00 : f32
    %10 = vector.broadcast %cst_8 : f32 to vector<8x256xf32>
    %11 = arith.maximumf %9, %10 : vector<8x256xf32>
    %12 = vector.shape_cast %11 : vector<8x256xf32> to vector<1x8x256xf32>
    %c0_9 = arith.constant 0 : index
    %c0_10 = arith.constant 0 : index
    %c0_11 = arith.constant 0 : index
    %13 = vector.load %arg6[%c0_9, %c0_10, %c0_11] : memref<1x8x256xf32, #tpu.memory_space<vmem>>, vector<1x8x256xf32>
    tpu.vector_store %arg6[%c0_9, %c0_10, %c0_11], %12 {strides = array<i32>} : memref<1x8x256xf32, #tpu.memory_space<vmem>>, vector<1x8x256xf32>,
    return
  }
  func.func @transform_0(%arg0: i32, %arg1: i32) -> (i32, i32, i32) {
    %c0_i32 = arith.constant 0 : i32
    %c0_i32_0 = arith.constant 0 : i32
    return %arg0, %c0_i32, %arg1 : i32, i32, i32
  }
  func.func @transform_1(%arg0: i32, %arg1: i32) -> (i32, i32) {
    %c0_i32 = arith.constant 0 : i32
    %c0_i32_0 = arith.constant 0 : i32
    %c0_i32_1 = arith.constant 0 : i32
    return %c0_i32, %c0_i32_0 : i32, i32
  }
  func.func @transform_2(%arg0: i32, %arg1: i32) -> (i32, i32) {
    %c0_i32 = arith.constant 0 : i32
    %c0_i32_0 = arith.constant 0 : i32
    %c0_i32_1 = arith.constant 0 : i32
    return %c0_i32, %c0_i32_0 : i32, i32
  }
  func.func @transform_3(%arg0: i32, %arg1: i32) -> (i32, i32) {
    %c0_i32 = arith.constant 0 : i32
    %c0_i32_0 = arith.constant 0 : i32
    %c0_i32_1 = arith.constant 0 : i32
    return %c0_i32, %c0_i32_0 : i32, i32
  }
  func.func @transform_4(%arg0: i32, %arg1: i32) -> (i32, i32, i32) {
    %c0_i32 = arith.constant 0 : i32
    %c0_i32_0 = arith.constant 0 : i32
    return %arg0, %c0_i32, %arg1 : i32, i32, i32
  }
}

</mosaic_0001>

<llo_original>
// kernel: conv_block.2
$region0: #{conv_block.2}
  #allocation0 [shape = 'u32[]', space=smem, size = 0x4, offset = 0x4, fixed_abs, tag = 'smem constant byte address 0x4 - core index']
  #allocation1 [shape = 'u32[144,128]{1,0:T(1,128)}', space=vmem, size = 0x12000, scoped, tag = 'internal scratch']
  %s0 = inlined_call_operand.vmem [shape: f32[2,8,256], index: 0, kind: input, shape index: {}]
  %s1 = inlined_call_operand.vmem [shape: f32[8,8], index: 1, kind: input, shape index: {}]
  %s2 = inlined_call_operand.vmem [shape: f32[1,8,1], index: 2, kind: output, shape index: {0}]
  %s3 = inlined_call_operand.vmem [shape: f32[1,8,1], index: 3, kind: output, shape index: {1}]
  %4 = xla_tuple %s2, %s3
  %s5 = sld [smem:[#allocation0]]
  $region53: #{conv_block.2} parent=0
    _
  %s7 = ssub.s32 1, %s5
  %s8 = scalar_select 0, %s7, %s5
  loop: start=0, step=1, limit=4
  $region2: #{conv_block.2} parent=0 // loop_pre_header
    _
  $region3: #{conv_block.2} parent=0 // loop_header
    %s10 = sphi 0, %s14
    %p11 = scmp.ge.s32.totalorder %s10, 4
    %s17 = sphi 0, %s36
    %s18 = sphi 0, %s32
    %s19 = sphi 0, %s28
    %s20 = sphi 0, %s17
    %s21 = sphi 0, %s18
    %s22 = sphi 0, %s19
    %s23 = sphi 0, %s20
    %s24 = sphi 0, %s21
    %s25 = sphi 0, %s22
    %s43 = sphi 0, %s45
    %s46 = sphi 0, %s43
    %s47 = sphi 0, %s46
    %s63 = sphi 0, %s47
    %s67 = sphi 0, %s67
    %s69 = sphi 0, %s67
    %s70 = sphi 0, %s69
    %s84 = sphi 0, %s70
    %s90 = sphi 0, %s92
    %s93 = sphi 0, %s90
    %s94 = sphi 0, %s93
    %s110 = sphi 0, %s94
    %s116 = sphi 0, %s118
    %s119 = sphi 0, %s116
    %s120 = sphi 0, %s119
    %s136 = sphi 0, %s120
  $region4: #{conv_block.2} parent=0 // loop_header_branch
    %13 = sbr.rel (%p11) target = $region8
  $region5: #{conv_block.2} parent=0 // loop_body
    %s15 = ssub.s32 %s10, 1
    %s16 = ssub.s32 %s10, 2
    %s26 = sadd.s32 1, %s19
    %p27 = scmp.ge.s32.totalorder %s26, 1
    %s28 = scalar_select %p27, 0, %s26
    %s29 = sadd.s32 1, %s18
    %s30 = scalar_select %p27, %s29, %s18
    %p31 = scmp.ge.s32.totalorder %s30, 2
    %s32 = scalar_select %p31, 0, %s30
    %s33 = sadd.s32 1, %s17
    %s34 = scalar_select %p31, %s33, %s17
    %p35 = scmp.ge.s32.totalorder %s34, 1
    %s36 = scalar_select %p35, 0, %s34
    %s37 = sadd.s32 %s17, %s19
    %s38 = sadd.s32 %s36, %s28
    %s39 = ssub.s32 %s18, %s32
    %s40 = ssub.s32 %s37, %s38
    %s41 = sor.u32 %s39, %s40
    %p42 = scmp.eq.s32.totalorder %s41, 0
    %s44 = sadd.s32 %s43, 1
    %s45 = scalar_select %p42, %s43, %s44
    %p48 = pneg %p42
    %p49 = scmp.eq.s32.totalorder %s10, 1
    %p50 = por %p48, %p49
    %p51 = scmp.ne.s32.totalorder %s43, %s46
    %p52 = scmp.eq.s32.totalorder %s10, 0
    %p53 = por %p51, %p52
    %p54 = scmp.ne.s32.totalorder %s43, %s46
    %p55 = scmp.eq.s32.totalorder %s15, 1
    %p56 = por %p54, %p55
    %p57 = scmp.ne.s32.totalorder %s46, %s47
    %p58 = scmp.eq.s32.totalorder %s15, 0
    %p59 = por %p57, %p58
    %p60 = scmp.ne.s32.totalorder %s46, %s47
    %p61 = scmp.eq.s32.totalorder %s16, 1
    %p62 = por %p60, %p61
    %p64 = scmp.ne.s32.totalorder %s47, %s63
    %p65 = scmp.eq.s32.totalorder %s16, 0
    %p66 = por %p64, %p65
    %s68 = sadd.s32 %s67, 1
    %p71 = scmp.eq.s32.totalorder %s10, 1
    %p72 = scmp.ne.s32.totalorder %s67, %s69
    %p73 = scmp.eq.s32.totalorder %s10, 0
    %p74 = por %p72, %p73
    %p75 = scmp.ne.s32.totalorder %s67, %s69
    %p76 = scmp.eq.s32.totalorder %s15, 1
    %p77 = por %p75, %p76
    %p78 = scmp.ne.s32.totalorder %s69, %s70
    %p79 = scmp.eq.s32.totalorder %s15, 0
    %p80 = por %p78, %p79
    %p81 = scmp.ne.s32.totalorder %s69, %s70
    %p82 = scmp.eq.s32.totalorder %s16, 1
    %p83 = por %p81, %p82
    %p85 = scmp.ne.s32.totalorder %s70, %s84
    %p86 = scmp.eq.s32.totalorder %s16, 0
    %p87 = por %p85, %p86
    %s88 = ssub.s32 %s17, %s36
    %p89 = scmp.eq.s32.totalorder %s88, 0
    %s91 = sadd.s32 %s90, 1
    %s92 = scalar_select %p89, %s90, %s91
    %p95 = pneg %p89
    %p96 = scmp.eq.s32.totalorder %s10, 1
    %p97 = por %p95, %p96
    %p98 = scmp.ne.s32.totalorder %s90, %s93
    %p99 = scmp.eq.s32.totalorder %s10, 0
    %p100 = por %p98, %p99
    %p101 = scmp.ne.s32.totalorder %s90, %s93
    %p102 = scmp.eq.s32.totalorder %s15, 1
    %p103 = por %p101, %p102
    %p104 = scmp.ne.s32.totalorder %s93, %s94
    %p105 = scmp.eq.s32.totalorder %s15, 0
    %p106 = por %p104, %p105
    %p107 = scmp.ne.s32.totalorder %s93, %s94
    %p108 = scmp.eq.s32.totalorder %s16, 1
    %p109 = por %p107, %p108
    %p111 = scmp.ne.s32.totalorder %s94, %s110
    %p112 = scmp.eq.s32.totalorder %s16, 0
    %p113 = por %p111, %p112
    %s114 = ssub.s32 %s17, %s36
    %p115 = scmp.eq.s32.totalorder %s114, 0
    %s117 = sadd.s32 %s116, 1
    %s118 = scalar_select %p115, %s116, %s117
    %p121 = pneg %p115
    %p122 = scmp.eq.s32.totalorder %s10, 1
    %p123 = por %p121, %p122
    %p124 = scmp.ne.s32.totalorder %s116, %s119
    %p125 = scmp.eq.s32.totalorder %s10, 0
    %p126 = por %p124, %p125
    %p127 = scmp.ne.s32.totalorder %s116, %s119
    %p128 = scmp.eq.s32.totalorder %s15, 1
    %p129 = por %p127, %p128
    %p130 = scmp.ne.s32.totalorder %s119, %s120
    %p131 = scmp.eq.s32.totalorder %s15, 0
    %p132 = por %p130, %p131
    %p133 = scmp.ne.s32.totalorder %s119, %s120
    %p134 = scmp.eq.s32.totalorder %s16, 1
    %p135 = por %p133, %p134
    %p137 = scmp.ne.s32.totalorder %s120, %s136
    %p138 = scmp.eq.s32.totalorder %s16, 0
    %p139 = por %p137, %p138
    %p140 = scmp.le.s32.totalorder 1, %s10
    %p141 = scmp.lt.s32.totalorder %s10, 3
    %p142 = pnand %p140, %p141
    %p143 = pneg %p142
    // Predicated region
    $region9: #{conv_block.2} parent=5 // pred_check
      _
    $region10: #{conv_block.2} parent=5 // pred_check_branch
      %145 = sbr.rel (%p142) target = $region12
    $region11: #{conv_block.2} parent=5 // pred_region
      %s146 = ssub.s32 %s10, 1
      // Predicated region
      $region13: #{conv_block.2} parent=11 // pred_check
        %p147 = pneg %p80
      $region14: #{conv_block.2} parent=11 // pred_check_branch
        %149 = sbr.rel (%p147) target = $region16
      $region15: #{conv_block.2} parent=11 // pred_region
        _
      $region16: #{conv_block.2} parent=11 // pred_fallthru
        _
    $region12: #{conv_block.2} parent=5 // pred_fallthru
      _
    %p150 = scmp.lt.s32.totalorder %s10, 2
    // Predicated region
    $region17: #{conv_block.2} parent=5 // pred_check
      %p151 = pneg %p150
    $region18: #{conv_block.2} parent=5 // pred_check_branch
      %153 = sbr.rel (%p151) target = $region20
    $region19: #{conv_block.2} parent=5 // pred_region
      // Predicated region
      $region21: #{conv_block.2} parent=19 // pred_check
        %p154 = pneg %p53
      $region22: #{conv_block.2} parent=19 // pred_check_branch
        %156 = sbr.rel (%p154) target = $region24
      $region23: #{conv_block.2} parent=19 // pred_region
        %s157 = sadd.s32 %s17, %s19
        %s158 = smul.u32 2, %s157
        %p159 = scmp.lt.s32.totalorder %s18, 1
        %s160 = scalar_select %p159, %s18, 1
        %p161 = scmp.lt.s32.totalorder %s158, 1
        %s162 = scalar_select %p161, %s158, 1
        %s163 = smul.addr %s160, 2
        %s164 = sadd.s32 %s162, %s163
        %s165 = smul.addr %s164, 8
        %s166 = scalar_lea.vmem %s0, %s165
        %s167 = sadd.s32 %s17, %s19
        %s168 = smul.u32 2, %s167
      $region24: #{conv_block.2} parent=19 // pred_fallthru
        _
    $region20: #{conv_block.2} parent=5 // pred_fallthru
      _
    %p169 = scmp.le.s32.totalorder 1, %s10
    %p170 = scmp.lt.s32.totalorder %s10, 3
    %p171 = pnand %p169, %p170
    %p172 = pneg %p171
    // Predicated region
    $region25: #{conv_block.2} parent=5 // pred_check
      _
    $region26: #{conv_block.2} parent=5 // pred_check_branch
      %174 = sbr.rel (%p171) target = $region28
    $region27: #{conv_block.2} parent=5 // pred_region
      %s175 = ssub.s32 %s10, 1
      %s176 = sadd.s32 %s20, %s22
      %s177 = smul.u32 2, %s176
      %p178 = scmp.lt.s32.totalorder %s21, 1
      %s179 = scalar_select %p178, %s21, 1
      %p180 = scmp.lt.s32.totalorder %s177, 1
      %s181 = scalar_select %p180, %s177, 1
      %s182 = smul.addr %s179, 2
      %s183 = sadd.s32 %s181, %s182
      %s184 = smul.addr %s183, 8
      %s185 = scalar_lea.vmem %s0, %s184
      %p186 = pneg %p59
      %p187 = pneg %p56
      %p188 = pneg %p80
      %p189 = pneg %p77
      %p190 = pneg %p106
      %p191 = pneg %p103
      %p192 = scmp.lt.s32.totalorder %s20, 0
      %s193 = scalar_select %p192, %s20, 0
      %s194 = smul.addr %s193, 8
      %s195 = scalar_lea.vmem %s2, %s194
      %p196 = pneg %p132
      %p197 = pneg %p129
      %p198 = scmp.lt.s32.totalorder %s20, 0
      %s199 = scalar_select %p198, %s20, 0
      %s200 = smul.addr %s199, 8
      %s201 = scalar_lea.vmem %s3, %s200
      %s202 = sadd.s32 %s20, %s22
      %s203 = smul.u32 2, %s202
      %p204 = scmp.lt.s32.totalorder %s21, 1
      %s205 = scalar_select %p204, %s21, 1
      %p206 = scmp.lt.s32.totalorder %s203, 1
      %s207 = scalar_select %p206, %s203, 1
      %s208 = smul.addr %s205, 2
      %s209 = sadd.s32 %s207, %s208
      %s210 = smul.addr %s209, 8
      %s211 = scalar_lea.vmem %s0, %s210
      %s212 = sadd.s32 %s20, %s22
      %s213 = smul.u32 2, %s212
      %p214 = scmp.lt.s32.totalorder %s20, 0
      %s215 = scalar_select %p214, %s20, 0
      %s216 = smul.addr %s215, 8
      %s217 = scalar_lea.vmem %s2, %s216
      %p218 = scmp.lt.s32.totalorder %s20, 0
      %s219 = scalar_select %p218, %s20, 0
      %s220 = smul.addr %s219, 8
      %s221 = scalar_lea.vmem %s3, %s220
      %p222 = scmp.eq.s32.totalorder %s21, 0
      %p223 = scmp.eq.s32.totalorder %s22, 0
      %p224 = pnand %p222, %p223
      %p225 = pneg %p224
      // Predicated region
      $region29: #{conv_block.2} parent=27 // pred_check
        _
      $region30: #{conv_block.2} parent=27 // pred_check_branch
        %227 = sbr.rel (%p224) target = $region32
      $region31: #{conv_block.2} parent=27 // pred_region
        %vm228 = vcmask 7168
        %229 = vst.msk [vmem:[%s217] sm:$0xff] %vm228, 0.0
        %230 = vst.msk [vmem:[%s221] sm:$0xff] %vm228, 0.0
      $region32: #{conv_block.2} parent=27 // pred_fallthru
        _
      %v231 = vld [vmem:[%s1] sm:$0xff]
      %v232 = vld [vmem:[%s211] sm:$0xff]
      %v233 = vld [vmem:[%s211 + $0x8] sm:$0xff]
      %vm234 = vcmask 64512
      %v236 = vsel %vm234, %v231, 0
      %238 = vmatprep.subr.mxu0 %v233
      %239 = vmatpush1.msra.mxu0 %v232
      %240 = vmatprep.subr.mxu0 0.0
      %241 = vmatpush1.msra.mxu0 0.0
      %242 = vmatprep.subr.mxu0 0.0
      %243 = vmatpush1.msra.mxu0 0.0
      %244 = vmatprep.subr.mxu0 0.0
      %245 = vmatpush1.msra.mxu0 0.0
      %246 = vmatprep.subr.mxu0 0.0
      %247 = vmatpush1.msra.mxu0 0.0
      %248 = vmatprep.subr.mxu0 0.0
      %249 = vmatpush1.msra.mxu0 0.0
      %250 = vmatprep.subr.mxu0 0.0
      %251 = vmatpush1.msra.mxu0 0.0
      %252 = vmatprep.subr.mxu0 0.0
      %253 = vmatpush1.msra.mxu0 0.0
      %254 = vmatprep.subr.mxu0 0.0
      %255 = vmatpush1.msra.mxu0 0.0
      %256 = vmatprep.subr.mxu0 0.0
      %257 = vmatpush1.msra.mxu0 0.0
      %258 = vmatprep.subr.mxu0 0.0
      %259 = vmatpush1.msra.mxu0 0.0
      %260 = vmatprep.subr.mxu0 0.0
      %261 = vmatpush1.msra.mxu0 0.0
      %262 = vmatprep.subr.mxu0 0.0
      %263 = vmatpush1.msra.mxu0 0.0
      %264 = vmatprep.subr.mxu0 0.0
      %265 = vmatpush1.msra.mxu0 0.0
      %266 = vmatprep.subr.mxu0 0.0
      %267 = vmatpush1.msra.mxu0 0.0
      %268 = vmatprep.subr.mxu0 0.0
      %269 = vmatpush1.msra.mxu0 0.0
      %270 = vmatprep.subr.mxu0 0.0
      %271 = vmatpush1.msra.mxu0 0.0
      %272 = vmatprep.subr.mxu0 0.0
      %273 = vmatpush1.msra.mxu0 0.0
      %274 = vmatprep.subr.mxu0 0.0
      %275 = vmatpush1.msra.mxu0 0.0
      %276 = vmatprep.subr.mxu0 0.0
      %277 = vmatpush1.msra.mxu0 0.0
      %278 = vmatprep.subr.mxu0 0.0
      %279 = vmatpush1.msra.mxu0 0.0
      %280 = vmatprep.subr.mxu0 0.0
      %281 = vmatpush1.msra.mxu0 0.0
      %282 = vmatprep.subr.mxu0 0.0
      %283 = vmatpush1.msra.mxu0 0.0
      %284 = vmatprep.subr.mxu0 0.0
      %285 = vmatpush1.msra.mxu0 0.0
      %286 = vmatprep.subr.mxu0 0.0
      %287 = vmatpush1.msra.mxu0 0.0
      %288 = vmatprep.subr.mxu0 0.0
      %289 = vmatpush1.msra.mxu0 0.0
      %290 = vmatprep.subr.mxu0 0.0
      %291 = vmatpush1.msra.mxu0 0.0
      %292 = vmatprep.subr.mxu0 0.0
      %293 = vmatpush1.msra.mxu0 0.0
      %294 = vmatprep.subr.mxu0 0.0
      %295 = vmatpush1.msra.mxu0 0.0
      %296 = vmatprep.subr.mxu0 0.0
      %297 = vmatpush1.msra.mxu0 0.0
      %298 = vmatprep.subr.mxu0 0.0
      %299 = vmatpush1.msra.mxu0 0.0
      %300 = vmatprep.subr.mxu0 0.0
      %301 = vmatpush1.msra.mxu0 0.0
      %302 = vmatprep.mubr.f32.mxu0 0.0
      %303 = vmatmul.mubr.f32.gmra.mrb[0].mxu0 %v236
      %v304 = vpop.f32.mrb[0].mxu0
      %v305 = vadd.f32 0.0, %v304
      %v306 = vpop.f32.mrb[0].mxu0
      %v307 = vadd.f32 0.0, %v306
      %308 = vdwg.mxu0
      %v309 = vld [vmem:[%s217] sm:$0xff]
      %v310 = vadd.f32 %v305, %v307
      %311 = vadd.xlane.f32.xlu0 %v310
      %v312 = vpop.xlane.xlu0 %311
      %v313 = vadd.f32 %v309, %v312
      %vm314 = vcmask 7168
      %315 = vst.msk [vmem:[%s217] sm:$0xff] %vm314, %v313
      %v316 = vld [vmem:[%s221] sm:$0xff]
      %v317 = vmul.f32 %v305, %v305
      %v318 = vmul.f32 %v307, %v307
      %v319 = vadd.f32 %v317, %v318
      %320 = vadd.xlane.f32.xlu0 %v319
      %v321 = vpop.xlane.xlu0 %320
      %v322 = vadd.f32 %v316, %v321
      %323 = vst.msk [vmem:[%s221] sm:$0xff] %vm314, %v322
      %p324 = scmp.lt.s32.totalorder %s20, 0
      %s325 = scalar_select %p324, %s20, 0
      %s326 = smul.addr %s325, 8
      %s327 = scalar_lea.vmem %s2, %s326
      %p328 = scmp.lt.s32.totalorder %s20, 0
      %s329 = scalar_select %p328, %s20, 0
      %s330 = smul.addr %s329, 8
      %s331 = scalar_lea.vmem %s3, %s330
      // Predicated region
      $region33: #{conv_block.2} parent=27 // pred_check
        %p332 = pneg %p103
      $region34: #{conv_block.2} parent=27 // pred_check_branch
        %334 = sbr.rel (%p332) target = $region36
      $region35: #{conv_block.2} parent=27 // pred_region
        _
      $region36: #{conv_block.2} parent=27 // pred_fallthru
        _
      // Predicated region
      $region37: #{conv_block.2} parent=27 // pred_check
        %p335 = pneg %p129
      $region38: #{conv_block.2} parent=27 // pred_check_branch
        %337 = sbr.rel (%p335) target = $region40
      $region39: #{conv_block.2} parent=27 // pred_region
        _
      $region40: #{conv_block.2} parent=27 // pred_fallthru
        _
      // Predicated region
      $region41: #{conv_block.2} parent=27 // pred_check
        %p338 = pneg %p103
      $region42: #{conv_block.2} parent=27 // pred_check_branch
        %340 = sbr.rel (%p338) target = $region44
      $region43: #{conv_block.2} parent=27 // pred_region
        %p341 = scmp.lt.s32.totalorder %s20, 0
        %s342 = scalar_select %p341, %s20, 0
        %s343 = smul.addr %s342, 8
        %s344 = scalar_lea.vmem %s2, %s343
      $region44: #{conv_block.2} parent=27 // pred_fallthru
        _
      // Predicated region
      $region45: #{conv_block.2} parent=27 // pred_check
        %p345 = pneg %p129
      $region46: #{conv_block.2} parent=27 // pred_check_branch
        %347 = sbr.rel (%p345) target = $region48
      $region47: #{conv_block.2} parent=27 // pred_region
        %p348 = scmp.lt.s32.totalorder %s20, 0
        %s349 = scalar_select %p348, %s20, 0
        %s350 = smul.addr %s349, 8
        %s351 = scalar_lea.vmem %s3, %s350
      $region48: #{conv_block.2} parent=27 // pred_fallthru
        _
    $region28: #{conv_block.2} parent=5 // pred_fallthru
      _
    %p352 = scmp.le.s32.totalorder 2, %s10
    // Predicated region
    $region49: #{conv_block.2} parent=5 // pred_check
      %p353 = pneg %p352
    $region50: #{conv_block.2} parent=5 // pred_check_branch
      %355 = sbr.rel (%p353) target = $region52
    $region51: #{conv_block.2} parent=5 // pred_region
      %s356 = ssub.s32 %s10, 2
    $region52: #{conv_block.2} parent=5 // pred_fallthru
      _
  $region6: #{conv_block.2} parent=0 // loop_footer
    %s14 = sadd.s32 1, %s10
  $region7: #{conv_block.2} parent=0 // loop_footer_branch
    %9 = sbr.rel target = $region3
  $region8: #{conv_block.2} parent=0 // loop_exit
    _

// kernel: conv_block.3
$region0: #{conv_block.3}
  #allocation0 [shape = 'u32[]', space=smem, size = 0x4, offset = 0x4, fixed_abs, tag = 'smem constant byte address 0x4 - core index']
  #allocation1 [shape = 'u32[144,128]{1,0:T(1,128)}', space=vmem, size = 0x12000, scoped, tag = 'internal scratch']
  %s0 = inlined_call_operand.vmem [shape: f32[2,8,256], index: 0, kind: input, shape index: {}]
  %s1 = inlined_call_operand.vmem [shape: f32[8,8], index: 1, kind: input, shape index: {}]
  %s2 = inlined_call_operand.vmem [shape: f32[8,1], index: 2, kind: input, shape index: {}]
  %s3 = inlined_call_operand.vmem [shape: f32[8,1], index: 3, kind: input, shape index: {}]
  %s4 = inlined_call_operand.vmem [shape: f32[2,8,256], index: 4, kind: output, shape index: {}]
  %s5 = sld [smem:[#allocation0]]
  $region49: #{conv_block.3} parent=0
    _
  %s7 = ssub.s32 1, %s5
  %s8 = scalar_select 0, %s7, %s5
  loop: start=0, step=1, limit=4
  $region2: #{conv_block.3} parent=0 // loop_pre_header
    _
  $region3: #{conv_block.3} parent=0 // loop_header
    %s10 = sphi 0, %s14
    %p11 = scmp.ge.s32.totalorder %s10, 4
    %s17 = sphi 0, %s29
    %s18 = sphi 0, %s25
    %s19 = sphi 0, %s17
    %s20 = sphi 0, %s18
    %s21 = sphi 0, %s19
    %s22 = sphi 0, %s20
    %s34 = sphi 0, %s36
    %s37 = sphi 0, %s34
    %s38 = sphi 0, %s37
    %s54 = sphi 0, %s38
    %s58 = sphi 0, %s58
    %s60 = sphi 0, %s58
    %s61 = sphi 0, %s60
    %s75 = sphi 0, %s61
    %s79 = sphi 0, %s79
    %s81 = sphi 0, %s79
    %s82 = sphi 0, %s81
    %s96 = sphi 0, %s82
    %s100 = sphi 0, %s100
    %s102 = sphi 0, %s100
    %s103 = sphi 0, %s102
    %s117 = sphi 0, %s103
    %s125 = sphi 0, %s127
    %s128 = sphi 0, %s125
    %s129 = sphi 0, %s128
    %s145 = sphi 0, %s129
  $region4: #{conv_block.3} parent=0 // loop_header_branch
    %13 = sbr.rel (%p11) target = $region8
  $region5: #{conv_block.3} parent=0 // loop_body
    %s15 = ssub.s32 %s10, 1
    %s16 = ssub.s32 %s10, 2
    %s23 = sadd.s32 1, %s18
    %p24 = scmp.ge.s32.totalorder %s23, 1
    %s25 = scalar_select %p24, 0, %s23
    %s26 = sadd.s32 1, %s17
    %s27 = scalar_select %p24, %s26, %s17
    %p28 = scmp.ge.s32.totalorder %s27, 2
    %s29 = scalar_select %p28, 0, %s27
    %s30 = ssub.s32 %s17, %s29
    %s31 = ssub.s32 %s18, %s25
    %s32 = sor.u32 %s30, %s31
    %p33 = scmp.eq.s32.totalorder %s32, 0
    %s35 = sadd.s32 %s34, 1
    %s36 = scalar_select %p33, %s34, %s35
    %p39 = pneg %p33
    %p40 = scmp.eq.s32.totalorder %s10, 1
    %p41 = por %p39, %p40
    %p42 = scmp.ne.s32.totalorder %s34, %s37
    %p43 = scmp.eq.s32.totalorder %s10, 0
    %p44 = por %p42, %p43
    %p45 = scmp.ne.s32.totalorder %s34, %s37
    %p46 = scmp.eq.s32.totalorder %s15, 1
    %p47 = por %p45, %p46
    %p48 = scmp.ne.s32.totalorder %s37, %s38
    %p49 = scmp.eq.s32.totalorder %s15, 0
    %p50 = por %p48, %p49
    %p51 = scmp.ne.s32.totalorder %s37, %s38
    %p52 = scmp.eq.s32.totalorder %s16, 1
    %p53 = por %p51, %p52
    %p55 = scmp.ne.s32.totalorder %s38, %s54
    %p56 = scmp.eq.s32.totalorder %s16, 0
    %p57 = por %p55, %p56
    %s59 = sadd.s32 %s58, 1
    %p62 = scmp.eq.s32.totalorder %s10, 1
    %p63 = scmp.ne.s32.totalorder %s58, %s60
    %p64 = scmp.eq.s32.totalorder %s10, 0
    %p65 = por %p63, %p64
    %p66 = scmp.ne.s32.totalorder %s58, %s60
    %p67 = scmp.eq.s32.totalorder %s15, 1
    %p68 = por %p66, %p67
    %p69 = scmp.ne.s32.totalorder %s60, %s61
    %p70 = scmp.eq.s32.totalorder %s15, 0
    %p71 = por %p69, %p70
    %p72 = scmp.ne.s32.totalorder %s60, %s61
    %p73 = scmp.eq.s32.totalorder %s16, 1
    %p74 = por %p72, %p73
    %p76 = scmp.ne.s32.totalorder %s61, %s75
    %p77 = scmp.eq.s32.totalorder %s16, 0
    %p78 = por %p76, %p77
    %s80 = sadd.s32 %s79, 1
    %p83 = scmp.eq.s32.totalorder %s10, 1
    %p84 = scmp.ne.s32.totalorder %s79, %s81
    %p85 = scmp.eq.s32.totalorder %s10, 0
    %p86 = por %p84, %p85
    %p87 = scmp.ne.s32.totalorder %s79, %s81
    %p88 = scmp.eq.s32.totalorder %s15, 1
    %p89 = por %p87, %p88
    %p90 = scmp.ne.s32.totalorder %s81, %s82
    %p91 = scmp.eq.s32.totalorder %s15, 0
    %p92 = por %p90, %p91
    %p93 = scmp.ne.s32.totalorder %s81, %s82
    %p94 = scmp.eq.s32.totalorder %s16, 1
    %p95 = por %p93, %p94
    %p97 = scmp.ne.s32.totalorder %s82, %s96
    %p98 = scmp.eq.s32.totalorder %s16, 0
    %p99 = por %p97, %p98
    %s101 = sadd.s32 %s100, 1
    %p104 = scmp.eq.s32.totalorder %s10, 1
    %p105 = scmp.ne.s32.totalorder %s100, %s102
    %p106 = scmp.eq.s32.totalorder %s10, 0
    %p107 = por %p105, %p106
    %p108 = scmp.ne.s32.totalorder %s100, %s102
    %p109 = scmp.eq.s32.totalorder %s15, 1
    %p110 = por %p108, %p109
    %p111 = scmp.ne.s32.totalorder %s102, %s103
    %p112 = scmp.eq.s32.totalorder %s15, 0
    %p113 = por %p111, %p112
    %p114 = scmp.ne.s32.totalorder %s102, %s103
    %p115 = scmp.eq.s32.totalorder %s16, 1
    %p116 = por %p114, %p115
    %p118 = scmp.ne.s32.totalorder %s103, %s117
    %p119 = scmp.eq.s32.totalorder %s16, 0
    %p120 = por %p118, %p119
    %s121 = ssub.s32 %s17, %s29
    %s122 = ssub.s32 %s18, %s25
    %s123 = sor.u32 %s121, %s122
    %p124 = scmp.eq.s32.totalorder %s123, 0
    %s126 = sadd.s32 %s125, 1
    %s127 = scalar_select %p124, %s125, %s126
    %p130 = pneg %p124
    %p131 = scmp.eq.s32.totalorder %s10, 1
    %p132 = por %p130, %p131
    %p133 = scmp.ne.s32.totalorder %s125, %s128
    %p134 = scmp.eq.s32.totalorder %s10, 0
    %p135 = por %p133, %p134
    %p136 = scmp.ne.s32.totalorder %s125, %s128
    %p137 = scmp.eq.s32.totalorder %s15, 1
    %p138 = por %p136, %p137
    %p139 = scmp.ne.s32.totalorder %s128, %s129
    %p140 = scmp.eq.s32.totalorder %s15, 0
    %p141 = por %p139, %p140
    %p142 = scmp.ne.s32.totalorder %s128, %s129
    %p143 = scmp.eq.s32.totalorder %s16, 1
    %p144 = por %p142, %p143
    %p146 = scmp.ne.s32.totalorder %s129, %s145
    %p147 = scmp.eq.s32.totalorder %s16, 0
    %p148 = por %p146, %p147
    %p149 = scmp.le.s32.totalorder 1, %s10
    %p150 = scmp.lt.s32.totalorder %s10, 3
    %p151 = pnand %p149, %p150
    %p152 = pneg %p151
    // Predicated region
    $region9: #{conv_block.3} parent=5 // pred_check
      _
    $region10: #{conv_block.3} parent=5 // pred_check_branch
      %154 = sbr.rel (%p151) target = $region12
    $region11: #{conv_block.3} parent=5 // pred_region
      %s155 = ssub.s32 %s10, 1
      // Predicated region
      $region13: #{conv_block.3} parent=11 // pred_check
        %p156 = pneg %p71
      $region14: #{conv_block.3} parent=11 // pred_check_branch
        %158 = sbr.rel (%p156) target = $region16
      $region15: #{conv_block.3} parent=11 // pred_region
        _
      $region16: #{conv_block.3} parent=11 // pred_fallthru
        _
      // Predicated region
      $region17: #{conv_block.3} parent=11 // pred_check
        %p159 = pneg %p92
      $region18: #{conv_block.3} parent=11 // pred_check_branch
        %161 = sbr.rel (%p159) target = $region20
      $region19: #{conv_block.3} parent=11 // pred_region
        _
      $region20: #{conv_block.3} parent=11 // pred_fallthru
        _
      // Predicated region
      $region21: #{conv_block.3} parent=11 // pred_check
        %p162 = pneg %p113
      $region22: #{conv_block.3} parent=11 // pred_check_branch
        %164 = sbr.rel (%p162) target = $region24
      $region23: #{conv_block.3} parent=11 // pred_region
        _
      $region24: #{conv_block.3} parent=11 // pred_fallthru
        _
    $region12: #{conv_block.3} parent=5 // pred_fallthru
      _
    %p165 = scmp.lt.s32.totalorder %s10, 2
    // Predicated region
    $region25: #{conv_block.3} parent=5 // pred_check
      %p166 = pneg %p165
    $region26: #{conv_block.3} parent=5 // pred_check_branch
      %168 = sbr.rel (%p166) target = $region28
    $region27: #{conv_block.3} parent=5 // pred_region
      // Predicated region
      $region29: #{conv_block.3} parent=27 // pred_check
        %p169 = pneg %p44
      $region30: #{conv_block.3} parent=27 // pred_check_branch
        %171 = sbr.rel (%p169) target = $region32
      $region31: #{conv_block.3} parent=27 // pred_region
        %s172 = smul.u32 2, %s18
        %p173 = scmp.lt.s32.totalorder %s17, 1
        %s174 = scalar_select %p173, %s17, 1
        %p175 = scmp.lt.s32.totalorder %s172, 1
        %s176 = scalar_select %p175, %s172, 1
        %s177 = smul.addr %s174, 2
        %s178 = sadd.s32 %s176, %s177
        %s179 = smul.addr %s178, 8
        %s180 = scalar_lea.vmem %s0, %s179
        %s181 = smul.u32 2, %s18
      $region32: #{conv_block.3} parent=27 // pred_fallthru
        _
    $region28: #{conv_block.3} parent=5 // pred_fallthru
      _
    %p182 = scmp.le.s32.totalorder 1, %s10
    %p183 = scmp.lt.s32.totalorder %s10, 3
    %p184 = pnand %p182, %p183
    %p185 = pneg %p184
    // Predicated region
    $region33: #{conv_block.3} parent=5 // pred_check
      _
    $region34: #{conv_block.3} parent=5 // pred_check_branch
      %187 = sbr.rel (%p184) target = $region36
    $region35: #{conv_block.3} parent=5 // pred_region
      %s188 = ssub.s32 %s10, 1
      %s189 = smul.u32 2, %s20
      %p190 = scmp.lt.s32.totalorder %s19, 1
      %s191 = scalar_select %p190, %s19, 1
      %p192 = scmp.lt.s32.totalorder %s189, 1
      %s193 = scalar_select %p192, %s189, 1
      %s194 = smul.addr %s191, 2
      %s195 = sadd.s32 %s193, %s194
      %s196 = smul.addr %s195, 8
      %s197 = scalar_lea.vmem %s0, %s196
      %p198 = pneg %p50
      %p199 = pneg %p47
      %p200 = pneg %p71
      %p201 = pneg %p68
      %p202 = pneg %p92
      %p203 = pneg %p89
      %p204 = pneg %p113
      %p205 = pneg %p110
      %p206 = pneg %p141
      %p207 = pneg %p138
      %s208 = smul.u32 2, %s20
      %p209 = scmp.lt.s32.totalorder %s19, 1
      %s210 = scalar_select %p209, %s19, 1
      %p211 = scmp.lt.s32.totalorder %s208, 1
      %s212 = scalar_select %p211, %s208, 1
      %s213 = smul.addr %s210, 2
      %s214 = sadd.s32 %s212, %s213
      %s215 = smul.addr %s214, 8
      %s216 = scalar_lea.vmem %s4, %s215
      %s217 = smul.u32 2, %s20
      %p218 = scmp.lt.s32.totalorder %s19, 1
      %s219 = scalar_select %p218, %s19, 1
      %p220 = scmp.lt.s32.totalorder %s217, 1
      %s221 = scalar_select %p220, %s217, 1
      %s222 = smul.addr %s219, 2
      %s223 = sadd.s32 %s221, %s222
      %s224 = smul.addr %s223, 8
      %s225 = scalar_lea.vmem %s0, %s224
      %s226 = smul.u32 2, %s20
      %s227 = smul.u32 2, %s20
      %p228 = scmp.lt.s32.totalorder %s19, 1
      %s229 = scalar_select %p228, %s19, 1
      %p230 = scmp.lt.s32.totalorder %s227, 1
      %s231 = scalar_select %p230, %s227, 1
      %s232 = smul.addr %s229, 2
      %s233 = sadd.s32 %s231, %s232
      %s234 = smul.addr %s233, 8
      %s235 = scalar_lea.vmem %s4, %s234
      %s236 = smul.u32 2, %s20
      %v237 = vld [vmem:[%s1] sm:$0xff]
      %v238 = vld [vmem:[%s225] sm:$0xff]
      %v239 = vld [vmem:[%s225 + $0x8] sm:$0xff]
      %vm240 = vcmask 64512
      %v242 = vsel %vm240, %v237, 0
      %244 = vmatprep.subr.mxu0 %v239
      %245 = vmatpush1.msra.mxu0 %v238
      %246 = vmatprep.subr.mxu0 0.0
      %247 = vmatpush1.msra.mxu0 0.0
      %248 = vmatprep.subr.mxu0 0.0
      %249 = vmatpush1.msra.mxu0 0.0
      %250 = vmatprep.subr.mxu0 0.0
      %251 = vmatpush1.msra.mxu0 0.0
      %252 = vmatprep.subr.mxu0 0.0
      %253 = vmatpush1.msra.mxu0 0.0
      %254 = vmatprep.subr.mxu0 0.0
      %255 = vmatpush1.msra.mxu0 0.0
      %256 = vmatprep.subr.mxu0 0.0
      %257 = vmatpush1.msra.mxu0 0.0
      %258 = vmatprep.subr.mxu0 0.0
      %259 = vmatpush1.msra.mxu0 0.0
      %260 = vmatprep.subr.mxu0 0.0
      %261 = vmatpush1.msra.mxu0 0.0
      %262 = vmatprep.subr.mxu0 0.0
      %263 = vmatpush1.msra.mxu0 0.0
      %264 = vmatprep.subr.mxu0 0.0
      %265 = vmatpush1.msra.mxu0 0.0
      %266 = vmatprep.subr.mxu0 0.0
      %267 = vmatpush1.msra.mxu0 0.0
      %268 = vmatprep.subr.mxu0 0.0
      %269 = vmatpush1.msra.mxu0 0.0
      %270 = vmatprep.subr.mxu0 0.0
      %271 = vmatpush1.msra.mxu0 0.0
      %272 = vmatprep.subr.mxu0 0.0
      %273 = vmatpush1.msra.mxu0 0.0
      %274 = vmatprep.subr.mxu0 0.0
      %275 = vmatpush1.msra.mxu0 0.0
      %276 = vmatprep.subr.mxu0 0.0
      %277 = vmatpush1.msra.mxu0 0.0
      %278 = vmatprep.subr.mxu0 0.0
      %279 = vmatpush1.msra.mxu0 0.0
      %280 = vmatprep.subr.mxu0 0.0
      %281 = vmatpush1.msra.mxu0 0.0
      %282 = vmatprep.subr.mxu0 0.0
      %283 = vmatpush1.msra.mxu0 0.0
      %284 = vmatprep.subr.mxu0 0.0
      %285 = vmatpush1.msra.mxu0 0.0
      %286 = vmatprep.subr.mxu0 0.0
      %287 = vmatpush1.msra.mxu0 0.0
      %288 = vmatprep.subr.mxu0 0.0
      %289 = vmatpush1.msra.mxu0 0.0
      %290 = vmatprep.subr.mxu0 0.0
      %291 = vmatpush1.msra.mxu0 0.0
      %292 = vmatprep.subr.mxu0 0.0
      %293 = vmatpush1.msra.mxu0 0.0
      %294 = vmatprep.subr.mxu0 0.0
      %295 = vmatpush1.msra.mxu0 0.0
      %296 = vmatprep.subr.mxu0 0.0
      %297 = vmatpush1.msra.mxu0 0.0
      %298 = vmatprep.subr.mxu0 0.0
      %299 = vmatpush1.msra.mxu0 0.0
      %300 = vmatprep.subr.mxu0 0.0
      %301 = vmatpush1.msra.mxu0 0.0
      %302 = vmatprep.subr.mxu0 0.0
      %303 = vmatpush1.msra.mxu0 0.0
      %304 = vmatprep.subr.mxu0 0.0
      %305 = vmatpush1.msra.mxu0 0.0
      %306 = vmatprep.subr.mxu0 0.0
      %307 = vmatpush1.msra.mxu0 0.0
      %308 = vmatprep.mubr.f32.mxu0 0.0
      %309 = vmatmul.mubr.f32.gmra.mrb[0].mxu0 %v242
      %v310 = vpop.f32.mrb[0].mxu0
      %v311 = vadd.f32 0.0, %v310
      %v312 = vpop.f32.mrb[0].mxu0
      %v313 = vadd.f32 0.0, %v312
      %314 = vdwg.mxu0
      %v315 = vld [vmem:[%s2] sm:$0xff]
      %317 = vset.pattern.permute.xlu0 0
      %318 = vperm.xlu0 %317, %v315
      %v319 = vpop.permute.xlu0 %318
      %v321 = vmul.f32 %v311, %v319
      %v322 = vmul.f32 %v313, %v319
      %v323 = vld [vmem:[%s3] sm:$0xff]
      %325 = vset.pattern.permute.xlu0 0
      %326 = vperm.xlu0 %325, %v323
      %v327 = vpop.permute.xlu0 %326
      %v329 = vadd.f32 %v321, %v327
      %v330 = vadd.f32 %v322, %v327
      %v331 = vmax.f32 %v329, 0.0
      %v332 = vmax.f32 %v330, 0.0
      %333 = vst [vmem:[%s235] sm:$0xff] %v331
      %334 = vst [vmem:[%s235 + $0x8] sm:$0xff] %v332
      %s335 = smul.u32 2, %s20
      %p336 = scmp.lt.s32.totalorder %s19, 1
      %s337 = scalar_select %p336, %s19, 1
      %p338 = scmp.lt.s32.totalorder %s335, 1
      %s339 = scalar_select %p338, %s335, 1
      %s340 = smul.addr %s337, 2
      %s341 = sadd.s32 %s339, %s340
      %s342 = smul.addr %s341, 8
      %s343 = scalar_lea.vmem %s4, %s342
      // Predicated region
      $region37: #{conv_block.3} parent=35 // pred_check
        %p344 = pneg %p138
      $region38: #{conv_block.3} parent=35 // pred_check_branch
        %346 = sbr.rel (%p344) target = $region40
      $region39: #{conv_block.3} parent=35 // pred_region
        %s347 = smul.u32 2, %s20
      $region40: #{conv_block.3} parent=35 // pred_fallthru
        _
    $region36: #{conv_block.3} parent=5 // pred_fallthru
      _
    %p348 = scmp.le.s32.totalorder 2, %s10
    // Predicated region
    $region41: #{conv_block.3} parent=5 // pred_check
      %p349 = pneg %p348
    $region42: #{conv_block.3} parent=5 // pred_check_branch
      %351 = sbr.rel (%p349) target = $region44
    $region43: #{conv_block.3} parent=5 // pred_region
      %s352 = ssub.s32 %s10, 2
      // Predicated region
      $region45: #{conv_block.3} parent=43 // pred_check
        %p353 = pneg %p144
      $region46: #{conv_block.3} parent=43 // pred_check_branch
        %355 = sbr.rel (%p353) target = $region48
      $region47: #{conv_block.3} parent=43 // pred_region
        %s356 = smul.u32 2, %s22
        %p357 = scmp.lt.s32.totalorder %s21, 1
        %s358 = scalar_select %p357, %s21, 1
        %p359 = scmp.lt.s32.totalorder %s356, 1
        %s360 = scalar_select %p359, %s356, 1
        %s361 = smul.addr %s358, 2
        %s362 = sadd.s32 %s360, %s361
        %s363 = smul.addr %s362, 8
        %s364 = scalar_lea.vmem %s4, %s363
      $region48: #{conv_block.3} parent=43 // pred_fallthru
        _
    $region44: #{conv_block.3} parent=5 // pred_fallthru
      _
  $region6: #{conv_block.3} parent=0 // loop_footer
    %s14 = sadd.s32 1, %s10
  $region7: #{conv_block.3} parent=0 // loop_footer_branch
    %9 = sbr.rel target = $region3
  $region8: #{conv_block.3} parent=0 // loop_exit
    _

</llo_original>
